<compile_context>
chip_gen: v6e
topology: v6e:2x2x1
jax: 0.10.0
libtpu: 0.0.40
codegen_flags: <defaults>
</compile_context>

<pallas_src>
import functools

import jax
import jax.numpy as jnp
from jax.experimental import pallas as pl
from jax.experimental.pallas import tpu as pltpu

LANES = 128


def _round_up(v: int, m: int) -> int:
    return ((v + m - 1) // m) * m


def _sublane(dtype) -> int:
    """Native sublane packing (rows per vreg) for the dtype."""
    size = jnp.dtype(dtype).itemsize
    if size >= 4:
        return 8
    if size == 2:
        return 16
    return 32


def _device_kind() -> str:
    try:
        return jax.devices()[0].device_kind.lower()
    except Exception:  # pragma: no cover - be robust off-TPU
        return ""


def _gaussian_kernel(params_ref, x_ref, o_ref, *, exp_dtype):
    # params_ref (SMEM, f32): [mu, coef] with coef = -0.5 / sigma^2.
    mu = params_ref[0]
    coef = params_ref[1]
    x = x_ref[...].astype(jnp.float32)
    d = x - mu
    arg = d * d * coef                 # squared term always in f32 (precision)
    o_ref[...] = jnp.exp(arg.astype(exp_dtype)).astype(o_ref.dtype)


def _pick_tm(rows: int, itemsize: int, sub: int, target_bytes: int,
             target_steps: int = 8) -> int:
    """Row-block size: aim for >= target_steps grid steps (pipeline fill/drain
    < ~1/8 of wall time; >= 2 steps per v7x TensorCore) while capping each block
    at ~target_bytes; always rounded to the dtype's native sublane packing."""
    max_tm = max(sub, (target_bytes // (LANES * itemsize)) // sub * sub)
    if rows <= sub:
        return rows  # single tiny full-extent block
    tm = _round_up(pl.cdiv(rows, target_steps), sub)
    tm = min(tm, max_tm, _round_up(rows, sub))
    return max(tm, sub)


def gaussian_kernel(x: jax.Array, mu: float = 1.0, sigma: float = 1.0,
                    *, min_pallas_bytes: int = 256 * 1024,
                    low_precision_exp: bool = False) -> jax.Array:
    """Elementwise Gaussian kernel.

    Pallas path for large, 128-aligned inputs; small or ragged inputs take a
    fused-XLA bypass (already near HBM roofline; avoids tail-stitch traffic).
    `low_precision_exp=True` runs the exp in bf16 on v6e/v7x for 16-bit I/O
    (square still in f32); opt-in because of reduced precision near x ~= mu.
    """
    mu = float(mu)
    coef = -0.5 / (float(sigma) * float(sigma))
    out_dtype = x.dtype if jnp.issubdtype(x.dtype, jnp.floating) else jnp.float32

    def _jnp_path(v):
        d = v.astype(jnp.float32) - mu
        return jnp.exp(d * d * coef).astype(out_dtype)

    n = x.size
    itemsize = jnp.dtype(x.dtype).itemsize
    # Fused-XLA bypass for small inputs (pallas_call launch overhead dominates)
    # and ragged inputs (n % 128 != 0): any in-JAX tail stitching would add
    # extra full-array HBM traffic to a purely bandwidth-bound op.
    if n * itemsize < min_pallas_bytes or n % LANES != 0:
        return _jnp_path(x)

    rows = n // LANES
    x2d = x.reshape(rows, LANES)  # zero-copy lane-dense slab

    kind = _device_kind()
    older_gen = ("v5" in kind) or ("v6" in kind)   # 128 MiB VMEM generations
    target_bytes = (4 * 1024 * 1024) if older_gen else (2 * 1024 * 1024)
    vmem_limit = (64 * 1024 * 1024) if older_gen else (32 * 1024 * 1024)

    sub = _sublane(x.dtype)
    tm = _pick_tm(rows, itemsize, sub, target_bytes)
    grid = (pl.cdiv(rows, tm),)

    # bf16 EUP exists on v6e/v7x only; keep f32 exp on v5e / unknown devices.
    use_bf16_exp = (low_precision_exp
                    and jnp.dtype(out_dtype).itemsize == 2
                    and ("v6" in kind or "v7" in kind or "7x" in kind))
    exp_dtype = jnp.bfloat16 if use_bf16_exp else jnp.float32

    params = jnp.array([mu, coef], dtype=jnp.float32)  # runtime SMEM scalars
    kernel = functools.partial(_gaussian_kernel, exp_dtype=exp_dtype)

    out_itemsize = jnp.dtype(out_dtype).itemsize
    cost = pl.CostEstimate(
        flops=3 * n,
        transcendentals=n,
        bytes_accessed=n * itemsize + n * out_itemsize,
    )

    out2d = pl.pallas_call(
        kernel,
        out_shape=jax.ShapeDtypeStruct((rows, LANES), out_dtype),
        grid_spec=pltpu.PrefetchScalarGridSpec(
            num_scalar_prefetch=0,
            grid=grid,
            in_specs=[
                pl.BlockSpec(memory_space=pltpu.MemorySpace.SMEM),   # [mu, coef]
                pl.BlockSpec((tm, LANES), lambda i: (i, 0)),
            ],
            out_specs=pl.BlockSpec((tm, LANES), lambda i: (i, 0)),
        ),
        compiler_params=pltpu.CompilerParams(
            dimension_semantics=("parallel",),
            vmem_limit_bytes=vmem_limit,
        ),
        cost_estimate=cost,
    )(params, x2d)

    return out2d.reshape(x.shape)


def gaussian_ref(x, mu=1.0, sigma=1.0):
    return jnp.exp(-0.5 * (x - mu) ** 2 / sigma ** 2)


if __name__ == "__main__":
    key = jax.random.PRNGKey(0)
    # NCHW input, as the PyTorch module would typically see.
    x = jax.random.normal(key, (2, 4, 16, 16), dtype=jnp.float32)
    mu, sigma = 1.0, 1.0
    y_ref = gaussian_ref(x, mu, sigma)

    # Force the Pallas path on the small test shape to exercise the kernel.
    y = jax.block_until_ready(gaussian_kernel(x, mu, sigma, min_pallas_bytes=0))
    assert y.shape == x.shape and y.dtype == x.dtype
    assert jnp.allclose(y, y_ref, atol=1e-6, rtol=1e-6)

    # Default path (small-input XLA bypass) must agree.
    y_bypass = jax.block_until_ready(gaussian_kernel(x, mu, sigma))
    assert jnp.allclose(y_bypass, y_ref, atol=1e-6, rtol=1e-6)

    # Larger f32 input: multi-block tiling (~8 grid steps, both v7x TCs).
    x_big = jax.random.normal(jax.random.PRNGKey(1), (64, 8, 32, 32), dtype=jnp.float32)
    y_big = jax.block_until_ready(gaussian_kernel(x_big, mu, sigma, min_pallas_bytes=0))
    assert jnp.allclose(y_big, gaussian_ref(x_big, mu, sigma), atol=1e-6, rtol=1e-6)

    # Different (mu, sigma): reuses the same compiled kernel (runtime SMEM params).
    y_ms = jax.block_until_ready(gaussian_kernel(x_big, 0.5, 2.0, min_pallas_bytes=0))
    assert jnp.allclose(y_ms, gaussian_ref(x_big, 0.5, 2.0), atol=1e-6, rtol=1e-6)

    # bf16 I/O (dtype-aware 16-row sublane blocks; f32 internal compute by default).
    x_bf16 = jax.random.normal(jax.random.PRNGKey(2), (32, 8, 16, 16), dtype=jnp.bfloat16)
    y_bf16 = jax.block_until_ready(gaussian_kernel(x_bf16, mu, sigma, min_pallas_bytes=0))
    ref_bf16 = gaussian_ref(x_bf16.astype(jnp.float32), mu, sigma)
    assert y_bf16.dtype == jnp.bfloat16
    assert jnp.allclose(y_bf16.astype(jnp.float32), ref_bf16, atol=2e-2)

    # Ragged shape (size not divisible by 128) takes the fused-XLA fallback.
    x_rag = jax.random.normal(jax.random.PRNGKey(3), (3, 5, 7), dtype=jnp.float32)
    y_rag = jax.block_until_ready(gaussian_kernel(x_rag, mu, sigma, min_pallas_bytes=0))
    assert jnp.allclose(y_rag, gaussian_ref(x_rag, mu, sigma), atol=1e-6, rtol=1e-6)

    # Integer input promotes to f32 output (matches torch.exp promotion).
    x_int = jnp.arange(24, dtype=jnp.int32).reshape(2, 3, 4)
    y_int = jax.block_until_ready(gaussian_kernel(x_int, mu, sigma))
    assert y_int.dtype == jnp.float32
    assert jnp.allclose(y_int, gaussian_ref(x_int.astype(jnp.float32), mu, sigma),
                        atol=1e-6, rtol=1e-6)

    print("KERNEL_OK")
</pallas_src>

<mosaic_0001>
module attributes {stable_mosaic.version = 11 : i64} {
  func.func @_gaussian_kernel(%arg0: i32, %arg1: memref<2xf32, #tpu.memory_space<smem>>, %arg2: memref<8x128xf32, #tpu.memory_space<vmem>>, %arg3: memref<8x128xf32, #tpu.memory_space<vmem>>) attributes {dimension_semantics = [#tpu.dimension_semantics<parallel>], iteration_bounds = array<i64: 2>, scalar_prefetch = 0 : i64, scratch_operands = 0 : i64, tpu.core_type = #tpu.core_type<tc>, window_params = [{transform_indices = @transform_0, window_bounds = array<i64: 2>}, {transform_indices = @transform_1, window_bounds = array<i64: 8, 128>}, {transform_indices = @transform_2, window_bounds = array<i64: 8, 128>}]} {
    %c0 = arith.constant 0 : index
    %0 = memref.load %arg1[%c0] : memref<2xf32, #tpu.memory_space<smem>>
    %c1 = arith.constant 1 : index
    %1 = memref.load %arg1[%c1] : memref<2xf32, #tpu.memory_space<smem>>
    %c0_0 = arith.constant 0 : index
    %c0_1 = arith.constant 0 : index
    %2 = vector.load %arg2[%c0_0, %c0_1] : memref<8x128xf32, #tpu.memory_space<vmem>>, vector<8x128xf32>
    %3 = vector.broadcast %0 : f32 to vector<8x128xf32>
    %4 = arith.subf %2, %3 : vector<8x128xf32>
    %5 = arith.mulf %4, %4 : vector<8x128xf32>
    %6 = vector.broadcast %1 : f32 to vector<8x128xf32>
    %7 = arith.mulf %5, %6 : vector<8x128xf32>
    %8 = math.exp %7 : vector<8x128xf32>
    %c0_2 = arith.constant 0 : index
    %c0_3 = arith.constant 0 : index
    %9 = vector.load %arg3[%c0_2, %c0_3] : memref<8x128xf32, #tpu.memory_space<vmem>>, vector<8x128xf32>
    tpu.vector_store %arg3[%c0_2, %c0_3], %8 {strides = array<i32>} : memref<8x128xf32, #tpu.memory_space<vmem>>, vector<8x128xf32>,
    return
  }
  func.func @transform_0(%arg0: i32) -> i32 {
    %c0_i32 = arith.constant 0 : i32
    %c0_i32_0 = arith.constant 0 : i32
    return %c0_i32 : i32
  }
  func.func @transform_1(%arg0: i32) -> (i32, i32) {
    %c0_i32 = arith.constant 0 : i32
    %c0_i32_0 = arith.constant 0 : i32
    return %arg0, %c0_i32 : i32, i32
  }
  func.func @transform_2(%arg0: i32) -> (i32, i32) {
    %c0_i32 = arith.constant 0 : i32
    %c0_i32_0 = arith.constant 0 : i32
    return %arg0, %c0_i32 : i32, i32
  }
}

</mosaic_0001>

<llo_original>
// kernel: tpu_custom_call.1
$region0: #{tpu_custom_call.1}
  #allocation0 [shape = 'u32[]', space=smem, size = 0x4, offset = 0x4, fixed_abs, tag = 'smem constant byte address 0x4 - core index']
  #allocation1 [shape = 'u32[144,128]{1,0:T(1,128)}', space=vmem, size = 0x12000, scoped, tag = 'internal scratch']
  %s0 = inlined_call_operand.hbm [shape: f32[2], index: 0, kind: input, shape index: {}]
  %s1 = inlined_call_operand.hbm [shape: f32[16,128], index: 1, kind: input, shape index: {}]
  %s2 = inlined_call_operand.hbm [shape: f32[16,128], index: 2, kind: output, shape index: {}]
  %s3 = sld [smem:[#allocation0]]
  $region49: #{tpu_custom_call.1} parent=0
    _
  %s5 = ssub.s32 1, %s3
  %s6 = scalar_select 0, %s5, %s3
  $region1: #{tpu_custom_call.1} parent=0
    #allocation2 [shape = 'u8[512]{0}', space=smem, size = 0x200, scoped, tag = 'input window, operand 0, single buffered']
    #allocation3 [shape = 's32[2]{0}', space=sflag, size = 0x8, scoped, tag = 'scoped memory for tpu_custom_call.1']
    #allocation4 [shape = 's32[2]{0}', space=sflag, size = 0x8, scoped, tag = 'scoped memory for tpu_custom_call.1']
    #allocation5 [shape = 's32[2]{0}', space=sflag, size = 0x8, scoped, tag = 'scoped memory for tpu_custom_call.1']
    #allocation6 [shape = 'u8[8192]{0}', space=vmem, size = 0x2000, scoped, tag = 'input window, operand 1']
    #allocation7 [shape = 'u8[8192]{0}', space=vmem, size = 0x2000, scoped, tag = 'output window, operand 0']
    %7 = vsyncpa [#allocation5], 0
    %8 = vsyncpa [#allocation3], 0
    %s9 = scalar_lea.sflag [#allocation3], 1
    %10 = vsyncpa %s9, 0
    %11 = vsyncpa [#allocation4], 0
    %s12 = scalar_lea.sflag [#allocation4], 1
    %13 = vsyncpa %s12, 0
    loop: start=0, step=1, limit=4
    $region2: #{tpu_custom_call.1} parent=1 // loop_pre_header
      _
    $region3: #{tpu_custom_call.1} parent=1 // loop_header
      %s15 = sphi 0, %s19
      %p16 = scmp.ge.s32.totalorder %s15, 4
      %s23 = sphi 0, %s23
      %s25 = sphi 0, %s23
      %s26 = sphi 0, %s25
      %s40 = sphi 0, %s26
      %s46 = sphi 0, %s48
      %s49 = sphi 0, %s46
      %s50 = sphi 0, %s49
      %s66 = sphi 0, %s50
      %s72 = sphi 0, %s74
      %s75 = sphi 0, %s72
      %s76 = sphi 0, %s75
      %s92 = sphi 0, %s76
    $region4: #{tpu_custom_call.1} parent=1 // loop_header_branch
      %18 = sbr.rel (%p16) target = $region8
    $region5: #{tpu_custom_call.1} parent=1 // loop_body
      %s20 = ssub.s32 %s15, 1
      %s21 = ssub.s32 %s15, 2
      %s22 = sadd.s32 %s15, 1
      %s24 = sadd.s32 %s23, 1
      %p27 = scmp.eq.s32.totalorder %s15, 1
      %p28 = scmp.ne.s32.totalorder %s23, %s25
      %p29 = scmp.eq.s32.totalorder %s15, 0
      %p30 = por %p28, %p29
      %p31 = scmp.ne.s32.totalorder %s23, %s25
      %p32 = scmp.eq.s32.totalorder %s20, 1
      %p33 = por %p31, %p32
      %p34 = scmp.ne.s32.totalorder %s25, %s26
      %p35 = scmp.eq.s32.totalorder %s20, 0
      %p36 = por %p34, %p35
      %p37 = scmp.ne.s32.totalorder %s25, %s26
      %p38 = scmp.eq.s32.totalorder %s21, 1
      %p39 = por %p37, %p38
      %p41 = scmp.ne.s32.totalorder %s26, %s40
      %p42 = scmp.eq.s32.totalorder %s21, 0
      %p43 = por %p41, %p42
      %s44 = ssub.s32 %s15, %s22
      %p45 = scmp.eq.s32.totalorder %s44, 0
      %s47 = sadd.s32 %s46, 1
      %s48 = scalar_select %p45, %s46, %s47
      %p51 = pneg %p45
      %p52 = scmp.eq.s32.totalorder %s15, 1
      %p53 = por %p51, %p52
      %p54 = scmp.ne.s32.totalorder %s46, %s49
      %p55 = scmp.eq.s32.totalorder %s15, 0
      %p56 = por %p54, %p55
      %p57 = scmp.ne.s32.totalorder %s46, %s49
      %p58 = scmp.eq.s32.totalorder %s20, 1
      %p59 = por %p57, %p58
      %p60 = scmp.ne.s32.totalorder %s49, %s50
      %p61 = scmp.eq.s32.totalorder %s20, 0
      %p62 = por %p60, %p61
      %p63 = scmp.ne.s32.totalorder %s49, %s50
      %p64 = scmp.eq.s32.totalorder %s21, 1
      %p65 = por %p63, %p64
      %p67 = scmp.ne.s32.totalorder %s50, %s66
      %p68 = scmp.eq.s32.totalorder %s21, 0
      %p69 = por %p67, %p68
      %s70 = ssub.s32 %s15, %s22
      %p71 = scmp.eq.s32.totalorder %s70, 0
      %s73 = sadd.s32 %s72, 1
      %s74 = scalar_select %p71, %s72, %s73
      %p77 = pneg %p71
      %p78 = scmp.eq.s32.totalorder %s15, 1
      %p79 = por %p77, %p78
      %p80 = scmp.ne.s32.totalorder %s72, %s75
      %p81 = scmp.eq.s32.totalorder %s15, 0
      %p82 = por %p80, %p81
      %p83 = scmp.ne.s32.totalorder %s72, %s75
      %p84 = scmp.eq.s32.totalorder %s20, 1
      %p85 = por %p83, %p84
      %p86 = scmp.ne.s32.totalorder %s75, %s76
      %p87 = scmp.eq.s32.totalorder %s20, 0
      %p88 = por %p86, %p87
      %p89 = scmp.ne.s32.totalorder %s75, %s76
      %p90 = scmp.eq.s32.totalorder %s21, 1
      %p91 = por %p89, %p90
      %p93 = scmp.ne.s32.totalorder %s76, %s92
      %p94 = scmp.eq.s32.totalorder %s21, 0
      %p95 = por %p93, %p94
      %p96 = scmp.le.s32.totalorder 1, %s15
      %p97 = scmp.lt.s32.totalorder %s15, 3
      %p98 = pnand %p96, %p97
      %p99 = pneg %p98
      // Predicated region
      $region9: #{tpu_custom_call.1} parent=5 // pred_check
        _
      $region10: #{tpu_custom_call.1} parent=5 // pred_check_branch
        %101 = sbr.rel (%p98) target = $region12
      $region11: #{tpu_custom_call.1} parent=5 // pred_region
        %s102 = ssub.s32 %s15, 1
        // Predicated region
        $region13: #{tpu_custom_call.1} parent=11 // pred_check
          %p103 = pneg %p36
        $region14: #{tpu_custom_call.1} parent=11 // pred_check_branch
          %105 = sbr.rel (%p103) target = $region16
        $region15: #{tpu_custom_call.1} parent=11 // pred_region
          %s107 = ssub.s32 16, 16
          %108 = vsyncadd [#allocation5], %s107
          %111 = dma.hbm_to_smem %s0, 16, [#allocation2], [#allocation5]
        $region16: #{tpu_custom_call.1} parent=11 // pred_fallthru
          _
      $region12: #{tpu_custom_call.1} parent=5 // pred_fallthru
        _
      %p112 = scmp.lt.s32.totalorder %s15, 2
      // Predicated region
      $region17: #{tpu_custom_call.1} parent=5 // pred_check
        %p113 = pneg %p112
      $region18: #{tpu_custom_call.1} parent=5 // pred_check_branch
        %115 = sbr.rel (%p113) target = $region20
      $region19: #{tpu_custom_call.1} parent=5 // pred_region
        // Predicated region
        $region21: #{tpu_custom_call.1} parent=19 // pred_check
          %p116 = pneg %p56
        $region22: #{tpu_custom_call.1} parent=19 // pred_check_branch
          %118 = sbr.rel (%p116) target = $region24
        $region23: #{tpu_custom_call.1} parent=19 // pred_region
          %s119 = sand.u32 %s46, 1
          %s120 = scalar_lea.sflag [#allocation3], %s119
          %s121 = sand.u32 %s46, 1
          %s122 = smul.addr %s121, 8
          %s123 = scalar_lea.vmem [#allocation6], %s122
          %s125 = ssub.s32 128, 128
          %126 = vsyncadd %s120, %s125
          %s127 = smul.addr %s15, 128
          %s128 = scalar_lea.hbm %s1, %s127
          %s130 = sshll.u32 %s123, 4
          %s131 = int_to_ptr.vmem [resolvable:$true] %s130
          %133 = dma.hbm_to_vmem [thread:$0]  %s128, 128, %s131, %s120
        $region24: #{tpu_custom_call.1} parent=19 // pred_fallthru
          _
      $region20: #{tpu_custom_call.1} parent=5 // pred_fallthru
        _
      %p134 = scmp.le.s32.totalorder 1, %s15
      %p135 = scmp.lt.s32.totalorder %s15, 3
      %p136 = pnand %p134, %p135
      %p137 = pneg %p136
      // Predicated region
      $region25: #{tpu_custom_call.1} parent=5 // pred_check
        _
      $region26: #{tpu_custom_call.1} parent=5 // pred_check_branch
        %139 = sbr.rel (%p136) target = $region28
      $region27: #{tpu_custom_call.1} parent=5 // pred_region
        %s140 = ssub.s32 %s15, 1
        // Predicated region
        $region29: #{tpu_custom_call.1} parent=27 // pred_check
          %p141 = pneg %p36
        $region30: #{tpu_custom_call.1} parent=27 // pred_check_branch
          %143 = sbr.rel (%p141) target = $region32
        $region31: #{tpu_custom_call.1} parent=27 // pred_region
          %144 = dma.done [#allocation5], 16
        $region32: #{tpu_custom_call.1} parent=27 // pred_fallthru
          _
        %s145 = sand.u32 %s49, 1
        %s146 = scalar_lea.sflag [#allocation3], %s145
        %s147 = sand.u32 %s49, 1
        %s148 = smul.addr %s147, 8
        %s149 = scalar_lea.vmem [#allocation6], %s148
        // Predicated region
        $region33: #{tpu_custom_call.1} parent=27 // pred_check
          %p150 = pneg %p62
        $region34: #{tpu_custom_call.1} parent=27 // pred_check_branch
          %152 = sbr.rel (%p150) target = $region36
        $region35: #{tpu_custom_call.1} parent=27 // pred_region
          %153 = dma.done %s146, 128
        $region36: #{tpu_custom_call.1} parent=27 // pred_fallthru
          _
        %154 = sfence
        %p155 = pneg %p36
        %p156 = pneg %p33
        %s157 = sand.u32 %s49, 1
        %s158 = scalar_lea.sflag [#allocation3], %s157
        %s159 = sand.u32 %s49, 1
        %s160 = smul.addr %s159, 8
        %s161 = scalar_lea.vmem [#allocation6], %s160
        %p162 = pneg %p62
        %p163 = pneg %p59
        %p164 = pneg %p88
        %p165 = pneg %p85
        %s166 = sand.u32 %s75, 1
        %s167 = scalar_lea.sflag [#allocation4], %s166
        %s168 = sand.u32 %s75, 1
        %s169 = smul.addr %s168, 8
        %s170 = scalar_lea.vmem [#allocation7], %s169
        %s171 = sld [smem:[#allocation2]]
        %s172 = sld [smem:[#allocation2 + $0x1]]
        %v173 = vld [vmem:[%s149] sm:$0xff]
        %v174 = vstv %s171
        %v175 = vsub.f32 %v173, %v174
        %v176 = vmul.f32 %v175, %v175
        %v177 = vstv %s172
        %v178 = vmul.f32 %v176, %v177
        %v179 = vmul.f32 %v178, 1.442695
        %v180 = vpow.pop %v179
        %181 = vst [vmem:[%s170] sm:$0xff] %v180
        %s182 = sand.u32 %s75, 1
        %s183 = scalar_lea.sflag [#allocation4], %s182
        %s184 = sand.u32 %s75, 1
        %s185 = smul.addr %s184, 8
        %s186 = scalar_lea.vmem [#allocation7], %s185
        // Predicated region
        $region37: #{tpu_custom_call.1} parent=27 // pred_check
          %p187 = pneg %p85
        $region38: #{tpu_custom_call.1} parent=27 // pred_check_branch
          %189 = sbr.rel (%p187) target = $region40
        $region39: #{tpu_custom_call.1} parent=27 // pred_region
          %s191 = ssub.s32 128, 128
          %192 = vsyncadd %s183, %s191
          %s193 = smul.addr %s20, 128
          %s194 = scalar_lea.hbm %s2, %s193
          %s196 = sshll.u32 %s186, 4
          %s197 = int_to_ptr.vmem [resolvable:$true] %s196
          %199 = dma.vmem_to_hbm [thread:$0]  %s197, 128, %s194, %s183
        $region40: #{tpu_custom_call.1} parent=27 // pred_fallthru
          _
      $region28: #{tpu_custom_call.1} parent=5 // pred_fallthru
        _
      %p200 = scmp.le.s32.totalorder 2, %s15
      // Predicated region
      $region41: #{tpu_custom_call.1} parent=5 // pred_check
        %p201 = pneg %p200
      $region42: #{tpu_custom_call.1} parent=5 // pred_check_branch
        %203 = sbr.rel (%p201) target = $region44
      $region43: #{tpu_custom_call.1} parent=5 // pred_region
        %s204 = ssub.s32 %s15, 2
        // Predicated region
        $region45: #{tpu_custom_call.1} parent=43 // pred_check
          %p205 = pneg %p91
        $region46: #{tpu_custom_call.1} parent=43 // pred_check_branch
          %207 = sbr.rel (%p205) target = $region48
        $region47: #{tpu_custom_call.1} parent=43 // pred_region
          %s208 = sand.u32 %s76, 1
          %s209 = scalar_lea.sflag [#allocation4], %s208
          %s210 = sand.u32 %s76, 1
          %s211 = smul.addr %s210, 8
          %s212 = scalar_lea.vmem [#allocation7], %s211
          %213 = dma.done %s209, 128
        $region48: #{tpu_custom_call.1} parent=43 // pred_fallthru
          _
      $region44: #{tpu_custom_call.1} parent=5 // pred_fallthru
        _
    $region6: #{tpu_custom_call.1} parent=1 // loop_footer
      %s19 = sadd.s32 1, %s15
    $region7: #{tpu_custom_call.1} parent=1 // loop_footer_branch
      %14 = sbr.rel target = $region3
    $region8: #{tpu_custom_call.1} parent=1 // loop_exit
      _
    %214 = vsyncpa [#allocation3], 1
    %s215 = scalar_lea.sflag [#allocation3], 1
    %216 = vsyncpa %s215, 1
    %217 = vsyncpa [#allocation4], 1
    %s218 = scalar_lea.sflag [#allocation4], 1
    %219 = vsyncpa %s218, 1
    %220 = vsyncpa [#allocation5], 1
    %s221 = scalar_lea.sflag [#allocation5], 1
    %222 = vsyncpa %s221, 1

</llo_original>
